<compile_context>
chip_gen: v6e
topology: v6e:2x2x1
jax: 0.10.0
libtpu: 0.0.40
codegen_flags: <defaults>
</compile_context>

<pallas_src>
import functools

import jax
import jax.numpy as jnp
from jax.experimental import pallas as pl
from jax.experimental.pallas import tpu as pltpu

_HEAD_LANES = 8  # lane-padded head width: lane 0 = qa, lane 1 = qb, rest zero


def _round_up(x, m):
    return ((x + m - 1) // m) * m


def _cdiv(a, b):
    return -(-a // b)


# ----------------------------------------------------------------------------- kernel
def _fctqv_kernel(x_ref, w0_ref, w1_ref, w2_ref, w3_ref,
                  b0_ref, b1_ref, b2_ref, b3_ref, out_ref):
    """Fused twin-Q MLP: 3 packed tanh layers + lane-padded MXU head.

    Weights arrive pre-packed ([Wa|Wb] layer 0, block-diagonal hidden layers,
    lane-padded head) and optionally pre-cast to bf16.  Matmuls accumulate in
    f32; bias add and tanh stay f32.
    """
    cd = w0_ref.dtype                       # MXU operand dtype (bf16 or f32)
    x = x_ref[...].astype(cd)

    # layer 0: concat(state, action) @ [Wa0 | Wb0]
    h = jnp.tanh(jnp.dot(x, w0_ref[...], preferred_element_type=jnp.float32)
                 + b0_ref[...])
    # hidden layers: block-diagonal packing keeps the two branches independent
    h = jnp.tanh(jnp.dot(h.astype(cd), w1_ref[...],
                         preferred_element_type=jnp.float32) + b1_ref[...])
    h = jnp.tanh(jnp.dot(h.astype(cd), w2_ref[...],
                         preferred_element_type=jnp.float32) + b2_ref[...])
    # head: single (2*H2, 8) MXU matmul -> lane 0 = qa, lane 1 = qb.
    # No XLU reductions, no concatenate, no 2-lane masked-store tail.
    out_ref[...] = (jnp.dot(h.astype(cd), w3_ref[...],
                            preferred_element_type=jnp.float32) + b3_ref[...])


# ----------------------------------------------------------------------------- params
def init_linear(key, fan_in, fan_out):
    """Deterministic U(-1/sqrt(fan_in), 1/sqrt(fan_in)) init (PyTorch-style bounds)."""
    kw, kb = jax.random.split(key)
    lim = 1.0 / jnp.sqrt(jnp.float32(fan_in))
    w = jax.random.uniform(kw, (fan_in, fan_out), jnp.float32, -lim, lim)
    b = jax.random.uniform(kb, (1, fan_out), jnp.float32, -lim, lim)
    return w, b


def init_fctqv_params(key, input_dim, output_dim):
    """Per-layer params matching the PyTorch module: (wa0, ba0, ..., wb3, bb3)."""
    hidden_dims = (input_dim * 2, input_dim * 4, input_dim * 8)
    dims = [input_dim + output_dim, hidden_dims[0], hidden_dims[1], hidden_dims[2], 1]
    params = []
    for _branch in range(2):                  # branch a, branch b
        for i in range(4):
            key, sub = jax.random.split(key)
            params.extend(init_linear(sub, dims[i], dims[i + 1]))
    return tuple(params)


def pack_fctqv_params(params, dtype=jnp.bfloat16):
    """One-time packing of the 16 per-layer tensors into 8 fused kernel buffers.

    `dtype` is the MXU operand dtype (bf16 for full-rate MXU on v6e/v7x,
    float32 for a bit-accurate validation path).  Biases stay float32.
    """
    (wa0, ba0, wa1, ba1, wa2, ba2, wa3, ba3,
     wb0, bb0, wb1, bb1, wb2, bb2, wb3, bb3) = params

    def block_diag(a, b):
        za = jnp.zeros((a.shape[0], b.shape[1]), jnp.float32)
        zb = jnp.zeros((b.shape[0], a.shape[1]), jnp.float32)
        return jnp.concatenate(
            [jnp.concatenate([a, za], axis=1),
             jnp.concatenate([zb, b], axis=1)], axis=0)

    w0 = jnp.concatenate([wa0, wb0], axis=1)          # (in+act, 2*H0)
    w1 = block_diag(wa1, wb1)                         # (2*H0, 2*H1)
    w2 = block_diag(wa2, wb2)                         # (2*H1, 2*H2)

    h2a, h2b = wa3.shape[0], wb3.shape[0]
    w3 = jnp.zeros((h2a + h2b, _HEAD_LANES), jnp.float32)   # lane-padded head
    w3 = w3.at[:h2a, 0:1].set(wa3).at[h2a:, 1:2].set(wb3)

    b0 = jnp.concatenate([ba0, bb0], axis=1)
    b1 = jnp.concatenate([ba1, bb1], axis=1)
    b2 = jnp.concatenate([ba2, bb2], axis=1)
    b3 = jnp.zeros((1, _HEAD_LANES), jnp.float32)
    b3 = b3.at[:, 0:1].set(ba3).at[:, 1:2].set(bb3)

    return (w0.astype(dtype), w1.astype(dtype), w2.astype(dtype),
            w3.astype(dtype), b0, b1, b2, b3)


# ----------------------------------------------------------------------------- wrapper
@functools.partial(jax.jit, static_argnames=("block_b",))
def fctqv_forward(state, action, packed_params, *, block_b=1024):
    """Returns (qa, qb), each of shape (B, 1) float32."""
    w0, w1, w2, w3, b0, b1, b2, b3 = packed_params

    # Wrapper-side concat -> one lane-dense input, cast to the MXU operand dtype.
    x = jnp.concatenate([state.astype(jnp.float32),
                         action.astype(jnp.float32)], axis=1).astype(w0.dtype)
    B, din = x.shape

    # Padding-aware batch tile.  Cap at 2048 (v5e scoped-VMEM headroom), keep at
    # least 2 grid steps for large batches so "parallel" shards across the two
    # v7x TensorCores, and round the tile to the 8-sublane granule.
    block_b = max(8, min(block_b, 2048))
    n_steps = _cdiv(B, block_b)
    if n_steps == 1 and B >= 256:
        n_steps = 2
    Bt = _round_up(_cdiv(B, n_steps), 8)
    B_pad = Bt * n_steps
    if B_pad != B:
        x = jnp.pad(x, ((0, B_pad - B), (0, 0)))

    n0, n1, n2 = w0.shape[1], w1.shape[1], w2.shape[1]
    flops = 2 * B_pad * (din * n0 + n0 * n1 + n1 * n2 + n2 * _HEAD_LANES)
    transcendentals = B_pad * (n0 + n1 + n2)
    bytes_accessed = (sum(p.size * p.dtype.itemsize for p in packed_params)
                      + x.size * x.dtype.itemsize
                      + B_pad * _HEAD_LANES * 4)

    const = lambda i: (0, 0)   # weights / biases stay VMEM-resident across steps

    out = pl.pallas_call(
        _fctqv_kernel,
        out_shape=jax.ShapeDtypeStruct((B_pad, _HEAD_LANES), jnp.float32),
        grid=(n_steps,),
        in_specs=[
            pl.BlockSpec((Bt, din), lambda i: (i, 0)),   # batch tile
            pl.BlockSpec(w0.shape, const),
            pl.BlockSpec(w1.shape, const),
            pl.BlockSpec(w2.shape, const),
            pl.BlockSpec(w3.shape, const),
            pl.BlockSpec(b0.shape, const),
            pl.BlockSpec(b1.shape, const),
            pl.BlockSpec(b2.shape, const),
            pl.BlockSpec(b3.shape, const),
        ],
        out_specs=pl.BlockSpec((Bt, _HEAD_LANES), lambda i: (i, 0)),
        compiler_params=pltpu.CompilerParams(
            dimension_semantics=("parallel",),
            vmem_limit_bytes=32 * 1024 * 1024),
        cost_estimate=pl.CostEstimate(
            flops=flops,
            transcendentals=transcendentals,
            bytes_accessed=bytes_accessed),
    )(x, w0, w1, w2, w3, b0, b1, b2, b3)

    qa = out[:B, 0:1]
    qb = out[:B, 1:2]
    return qa, qb


# ----------------------------------------------------------------------------- reference
def fctqv_reference(state, action, params):
    """Pure-JAX reference using the original per-layer (unpacked) parameters."""
    x = jnp.concatenate([state, action], axis=1).astype(jnp.float32)
    (wa0, ba0, wa1, ba1, wa2, ba2, wa3, ba3,
     wb0, bb0, wb1, bb1, wb2, bb2, wb3, bb3) = params

    def branch(w0, b0, w1, b1, w2, b2, w3, b3):
        h = jnp.tanh(x @ w0 + b0)
        h = jnp.tanh(h @ w1 + b1)
        h = jnp.tanh(h @ w2 + b2)
        return h @ w3 + b3

    return (branch(wa0, ba0, wa1, ba1, wa2, ba2, wa3, ba3),
            branch(wb0, bb0, wb1, bb1, wb2, bb2, wb3, bb3))


if __name__ == "__main__":
    input_dim = 16    # state dimension
    output_dim = 4    # action dimension

    key = jax.random.PRNGKey(0)
    k_params, k_state, k_action, k_state2, k_action2 = jax.random.split(key, 5)

    raw_params = init_fctqv_params(k_params, input_dim, output_dim)
    packed_f32 = pack_fctqv_params(raw_params, dtype=jnp.float32)
    packed_bf16 = pack_fctqv_params(raw_params, dtype=jnp.bfloat16)

    # --- small batch, single grid step: f32 path (tight) + bf16 perf path (loose)
    batch = 8
    state = jax.random.normal(k_state, (batch, input_dim), jnp.float32)
    action = jax.random.normal(k_action, (batch, output_dim), jnp.float32)
    qa_ref, qb_ref = fctqv_reference(state, action, raw_params)

    qa32, qb32 = fctqv_forward(state, action, packed_f32)
    jax.block_until_ready((qa32, qb32))
    assert qa32.shape == (batch, 1) and qb32.shape == (batch, 1)
    assert jnp.allclose(qa32, qa_ref, atol=1e-4, rtol=1e-4)
    assert jnp.allclose(qb32, qb_ref, atol=1e-4, rtol=1e-4)

    qa16, qb16 = fctqv_forward(state, action, packed_bf16)
    jax.block_until_ready((qa16, qb16))
    assert jnp.allclose(qa16, qa_ref, atol=1e-1, rtol=1e-1)
    assert jnp.allclose(qb16, qb_ref, atol=1e-1, rtol=1e-1)

    # --- ragged batch exercising the padding-aware multi-step grid
    batch2 = 300
    state2 = jax.random.normal(k_state2, (batch2, input_dim), jnp.float32)
    action2 = jax.random.normal(k_action2, (batch2, output_dim), jnp.float32)
    qa2, qb2 = fctqv_forward(state2, action2, packed_f32, block_b=128)
    jax.block_until_ready((qa2, qb2))
    qa2_ref, qb2_ref = fctqv_reference(state2, action2, raw_params)
    assert qa2.shape == (batch2, 1) and qb2.shape == (batch2, 1)
    assert jnp.allclose(qa2, qa2_ref, atol=1e-4, rtol=1e-4)
    assert jnp.allclose(qb2, qb2_ref, atol=1e-4, rtol=1e-4)

    print("KERNEL_OK")
</pallas_src>

<mosaic_0001>
module attributes {stable_mosaic.version = 11 : i64} {
  func.func @_fctqv_kernel(%arg0: i32, %arg1: memref<8x20xf32, #tpu.memory_space<vmem>>, %arg2: memref<20x64xf32, #tpu.memory_space<vmem>>, %arg3: memref<64x128xf32, #tpu.memory_space<vmem>>, %arg4: memref<128x256xf32, #tpu.memory_space<vmem>>, %arg5: memref<256x8xf32, #tpu.memory_space<vmem>>, %arg6: memref<1x64xf32, #tpu.memory_space<vmem>>, %arg7: memref<1x128xf32, #tpu.memory_space<vmem>>, %arg8: memref<1x256xf32, #tpu.memory_space<vmem>>, %arg9: memref<1x8xf32, #tpu.memory_space<vmem>>, %arg10: memref<8x8xf32, #tpu.memory_space<vmem>>) attributes {dimension_semantics = [#tpu.dimension_semantics<parallel>], iteration_bounds = array<i64: 1>, scalar_prefetch = 0 : i64, scratch_operands = 0 : i64, tpu.core_type = #tpu.core_type<tc>, window_params = [{transform_indices = @transform_0, window_bounds = array<i64: 8, 20>}, {pipeline_mode = #tpu.pipeline_mode<synchronous>, transform_indices = @transform_1, window_bounds = array<i64: 20, 64>}, {pipeline_mode = #tpu.pipeline_mode<synchronous>, transform_indices = @transform_2, window_bounds = array<i64: 64, 128>}, {pipeline_mode = #tpu.pipeline_mode<synchronous>, transform_indices = @transform_3, window_bounds = array<i64: 128, 256>}, {pipeline_mode = #tpu.pipeline_mode<synchronous>, transform_indices = @transform_4, window_bounds = array<i64: 256, 8>}, {pipeline_mode = #tpu.pipeline_mode<synchronous>, transform_indices = @transform_5, window_bounds = array<i64: 1, 64>}, {pipeline_mode = #tpu.pipeline_mode<synchronous>, transform_indices = @transform_6, window_bounds = array<i64: 1, 128>}, {pipeline_mode = #tpu.pipeline_mode<synchronous>, transform_indices = @transform_7, window_bounds = array<i64: 1, 256>}, {pipeline_mode = #tpu.pipeline_mode<synchronous>, transform_indices = @transform_8, window_bounds = array<i64: 1, 8>}, {transform_indices = @transform_9, window_bounds = array<i64: 8, 8>}]} {
    %c0 = arith.constant 0 : index
    %c0_0 = arith.constant 0 : index
    %0 = vector.load %arg1[%c0, %c0_0] : memref<8x20xf32, #tpu.memory_space<vmem>>, vector<8x20xf32>
    %c0_1 = arith.constant 0 : index
    %c0_2 = arith.constant 0 : index
    %1 = vector.load %arg2[%c0_1, %c0_2] : memref<20x64xf32, #tpu.memory_space<vmem>>, vector<20x64xf32>
    %cst = arith.constant dense<0.000000e+00> : vector<8x64xf32>
    %2 = tpu.matmul %0, %1, %cst {dimension_numbers = #tpu.dot_dimension_numbers<[1], [0], [0], [1], [0, 0, 1, 1], [], []>} : vector<8x20xf32>, vector<20x64xf32>, vector<8x64xf32> -> vector<8x64xf32>
    %c0_3 = arith.constant 0 : index
    %c0_4 = arith.constant 0 : index
    %3 = vector.load %arg6[%c0_3, %c0_4] : memref<1x64xf32, #tpu.memory_space<vmem>>, vector<1x64xf32>
    %4 = vector.broadcast %3 : vector<1x64xf32> to vector<8x64xf32>
    %5 = arith.addf %2, %4 : vector<8x64xf32>
    %6 = math.tanh %5 : vector<8x64xf32>
    %c0_5 = arith.constant 0 : index
    %c0_6 = arith.constant 0 : index
    %7 = vector.load %arg3[%c0_5, %c0_6] : memref<64x128xf32, #tpu.memory_space<vmem>>, vector<64x128xf32>
    %cst_7 = arith.constant dense<0.000000e+00> : vector<8x128xf32>
    %8 = tpu.matmul %6, %7, %cst_7 {dimension_numbers = #tpu.dot_dimension_numbers<[1], [0], [0], [1], [0, 0, 1, 1], [], []>} : vector<8x64xf32>, vector<64x128xf32>, vector<8x128xf32> -> vector<8x128xf32>
    %c0_8 = arith.constant 0 : index
    %c0_9 = arith.constant 0 : index
    %9 = vector.load %arg7[%c0_8, %c0_9] : memref<1x128xf32, #tpu.memory_space<vmem>>, vector<1x128xf32>
    %10 = vector.broadcast %9 : vector<1x128xf32> to vector<8x128xf32>
    %11 = arith.addf %8, %10 : vector<8x128xf32>
    %12 = math.tanh %11 : vector<8x128xf32>
    %c0_10 = arith.constant 0 : index
    %c0_11 = arith.constant 0 : index
    %13 = vector.load %arg4[%c0_10, %c0_11] : memref<128x256xf32, #tpu.memory_space<vmem>>, vector<128x256xf32>
    %cst_12 = arith.constant dense<0.000000e+00> : vector<8x256xf32>
    %14 = tpu.matmul %12, %13, %cst_12 {dimension_numbers = #tpu.dot_dimension_numbers<[1], [0], [0], [1], [0, 0, 1, 1], [], []>} : vector<8x128xf32>, vector<128x256xf32>, vector<8x256xf32> -> vector<8x256xf32>
    %c0_13 = arith.constant 0 : index
    %c0_14 = arith.constant 0 : index
    %15 = vector.load %arg8[%c0_13, %c0_14] : memref<1x256xf32, #tpu.memory_space<vmem>>, vector<1x256xf32>
    %16 = vector.broadcast %15 : vector<1x256xf32> to vector<8x256xf32>
    %17 = arith.addf %14, %16 : vector<8x256xf32>
    %18 = math.tanh %17 : vector<8x256xf32>
    %c0_15 = arith.constant 0 : index
    %c0_16 = arith.constant 0 : index
    %19 = vector.load %arg5[%c0_15, %c0_16] : memref<256x8xf32, #tpu.memory_space<vmem>>, vector<256x8xf32>
    %cst_17 = arith.constant dense<0.000000e+00> : vector<8x8xf32>
    %20 = tpu.matmul %18, %19, %cst_17 {dimension_numbers = #tpu.dot_dimension_numbers<[1], [0], [0], [1], [0, 0, 1, 1], [], []>} : vector<8x256xf32>, vector<256x8xf32>, vector<8x8xf32> -> vector<8x8xf32>
    %c0_18 = arith.constant 0 : index
    %c0_19 = arith.constant 0 : index
    %21 = vector.load %arg9[%c0_18, %c0_19] : memref<1x8xf32, #tpu.memory_space<vmem>>, vector<1x8xf32>
    %22 = vector.broadcast %21 : vector<1x8xf32> to vector<8x8xf32>
    %23 = arith.addf %20, %22 : vector<8x8xf32>
    %c0_20 = arith.constant 0 : index
    %c0_21 = arith.constant 0 : index
    %24 = vector.load %arg10[%c0_20, %c0_21] : memref<8x8xf32, #tpu.memory_space<vmem>>, vector<8x8xf32>
    tpu.vector_store %arg10[%c0_20, %c0_21], %23 {strides = array<i32>} : memref<8x8xf32, #tpu.memory_space<vmem>>, vector<8x8xf32>,
    return
  }
  func.func @transform_0(%arg0: i32) -> (i32, i32) {
    %c0_i32 = arith.constant 0 : i32
    %c0_i32_0 = arith.constant 0 : i32
    return %arg0, %c0_i32 : i32, i32
  }
  func.func @transform_1(%arg0: i32) -> (i32, i32) {
    %c0_i32 = arith.constant 0 : i32
    %c0_i32_0 = arith.constant 0 : i32
    %c0_i32_1 = arith.constant 0 : i32
    return %c0_i32, %c0_i32_0 : i32, i32
  }
  func.func @transform_2(%arg0: i32) -> (i32, i32) {
    %c0_i32 = arith.constant 0 : i32
    %c0_i32_0 = arith.constant 0 : i32
    %c0_i32_1 = arith.constant 0 : i32
    return %c0_i32, %c0_i32_0 : i32, i32
  }
  func.func @transform_3(%arg0: i32) -> (i32, i32) {
    %c0_i32 = arith.constant 0 : i32
    %c0_i32_0 = arith.constant 0 : i32
    %c0_i32_1 = arith.constant 0 : i32
    return %c0_i32, %c0_i32_0 : i32, i32
  }
  func.func @transform_4(%arg0: i32) -> (i32, i32) {
    %c0_i32 = arith.constant 0 : i32
    %c0_i32_0 = arith.constant 0 : i32
    %c0_i32_1 = arith.constant 0 : i32
    return %c0_i32, %c0_i32_0 : i32, i32
  }
  func.func @transform_5(%arg0: i32) -> (i32, i32) {
    %c0_i32 = arith.constant 0 : i32
    %c0_i32_0 = arith.constant 0 : i32
    %c0_i32_1 = arith.constant 0 : i32
    return %c0_i32, %c0_i32_0 : i32, i32
  }
  func.func @transform_6(%arg0: i32) -> (i32, i32) {
    %c0_i32 = arith.constant 0 : i32
    %c0_i32_0 = arith.constant 0 : i32
    %c0_i32_1 = arith.constant 0 : i32
    return %c0_i32, %c0_i32_0 : i32, i32
  }
  func.func @transform_7(%arg0: i32) -> (i32, i32) {
    %c0_i32 = arith.constant 0 : i32
    %c0_i32_0 = arith.constant 0 : i32
    %c0_i32_1 = arith.constant 0 : i32
    return %c0_i32, %c0_i32_0 : i32, i32
  }
  func.func @transform_8(%arg0: i32) -> (i32, i32) {
    %c0_i32 = arith.constant 0 : i32
    %c0_i32_0 = arith.constant 0 : i32
    %c0_i32_1 = arith.constant 0 : i32
    return %c0_i32, %c0_i32_0 : i32, i32
  }
  func.func @transform_9(%arg0: i32) -> (i32, i32) {
    %c0_i32 = arith.constant 0 : i32
    %c0_i32_0 = arith.constant 0 : i32
    return %arg0, %c0_i32 : i32, i32
  }
}

</mosaic_0001>

<llo_original>
// kernel: fctqv_forward.1
$region0: #{fctqv_forward.1}
  #allocation0 [shape = 'u32[]', space=smem, size = 0x4, offset = 0x4, fixed_abs, tag = 'smem constant byte address 0x4 - core index']
  #allocation1 [shape = 'u32[144,128]{1,0:T(1,128)}', space=vmem, size = 0x12000, scoped, tag = 'internal scratch']
  %s0 = inlined_call_operand.vmem [shape: f32[8,20], index: 0, kind: input, shape index: {}]
  %s1 = inlined_call_operand.vmem [shape: f32[20,64], index: 1, kind: input, shape index: {}]
  %s2 = inlined_call_operand.hbm [shape: f32[64,128], index: 2, kind: input, shape index: {}]
  %s3 = inlined_call_operand.vmem [shape: f32[128,256], index: 3, kind: input, shape index: {}]
  %s4 = inlined_call_operand.vmem [shape: f32[256,8], index: 4, kind: input, shape index: {}]
  %s5 = inlined_call_operand.vmem [shape: f32[1,64], index: 5, kind: input, shape index: {}]
  %s6 = inlined_call_operand.vmem [shape: f32[1,128], index: 6, kind: input, shape index: {}]
  %s7 = inlined_call_operand.vmem [shape: f32[1,256], index: 7, kind: input, shape index: {}]
  %s8 = inlined_call_operand.vmem [shape: f32[1,8], index: 8, kind: input, shape index: {}]
  %s9 = inlined_call_operand.vmem [shape: f32[8,8], index: 9, kind: output, shape index: {}]
  %s10 = sld [smem:[#allocation0]]
  $region50: #{fctqv_forward.1} parent=0
    _
  %s12 = ssub.s32 1, %s10
  %s13 = scalar_select 0, %s12, %s10
  $region1: #{fctqv_forward.1} parent=0
    #allocation2 [shape = 'u8[32768]{0}', space=vmem, size = 0x8000, scoped, tag = 'input window, operand 2, single buffered']
    #allocation3 [shape = 's32[1]{0}', space=sflag, size = 0x4, scoped, tag = 'scoped memory for fctqv_forward.1']
    %14 = vsyncpa [#allocation3], 0
    // Predicated region
    $region2: #{fctqv_forward.1} parent=1 // pred_check
      _
    $region3: #{fctqv_forward.1} parent=1 // pred_check_branch
      %16 = sbr.rel (0) target = $region5
    $region4: #{fctqv_forward.1} parent=1 // pred_region
      _
    $region5: #{fctqv_forward.1} parent=1 // pred_fallthru
      _
    // Predicated region
    $region6: #{fctqv_forward.1} parent=1 // pred_check
      _
    $region7: #{fctqv_forward.1} parent=1 // pred_check_branch
      %18 = sbr.rel (0) target = $region9
    $region8: #{fctqv_forward.1} parent=1 // pred_region
      _
    $region9: #{fctqv_forward.1} parent=1 // pred_fallthru
      _
    // Predicated region
    $region10: #{fctqv_forward.1} parent=1 // pred_check
      _
    $region11: #{fctqv_forward.1} parent=1 // pred_check_branch
      %20 = sbr.rel (0) target = $region13
    $region12: #{fctqv_forward.1} parent=1 // pred_region
      %s22 = ssub.s32 1024, 1024
      %23 = vsyncadd [#allocation3], %s22
      %s24 = sshll.u32 [#allocation2], 4
      %s25 = int_to_ptr.vmem [resolvable:$true] %s24
      %30 = dma.hbm_to_vmem [thread:$0]  %s2, 1024, %s25, [#allocation3], 128, 128, 8
    $region13: #{fctqv_forward.1} parent=1 // pred_fallthru
      _
    // Predicated region
    $region14: #{fctqv_forward.1} parent=1 // pred_check
      _
    $region15: #{fctqv_forward.1} parent=1 // pred_check_branch
      %32 = sbr.rel (0) target = $region17
    $region16: #{fctqv_forward.1} parent=1 // pred_region
      _
    $region17: #{fctqv_forward.1} parent=1 // pred_fallthru
      _
    // Predicated region
    $region18: #{fctqv_forward.1} parent=1 // pred_check
      _
    $region19: #{fctqv_forward.1} parent=1 // pred_check_branch
      %34 = sbr.rel (0) target = $region21
    $region20: #{fctqv_forward.1} parent=1 // pred_region
      _
    $region21: #{fctqv_forward.1} parent=1 // pred_fallthru
      _
    // Predicated region
    $region22: #{fctqv_forward.1} parent=1 // pred_check
      _
    $region23: #{fctqv_forward.1} parent=1 // pred_check_branch
      %36 = sbr.rel (0) target = $region25
    $region24: #{fctqv_forward.1} parent=1 // pred_region
      _
    $region25: #{fctqv_forward.1} parent=1 // pred_fallthru
      _
    // Predicated region
    $region26: #{fctqv_forward.1} parent=1 // pred_check
      _
    $region27: #{fctqv_forward.1} parent=1 // pred_check_branch
      %38 = sbr.rel (0) target = $region29
    $region28: #{fctqv_forward.1} parent=1 // pred_region
      _
    $region29: #{fctqv_forward.1} parent=1 // pred_fallthru
      _
    // Predicated region
    $region30: #{fctqv_forward.1} parent=1 // pred_check
      _
    $region31: #{fctqv_forward.1} parent=1 // pred_check_branch
      %40 = sbr.rel (0) target = $region33
    $region32: #{fctqv_forward.1} parent=1 // pred_region
      _
    $region33: #{fctqv_forward.1} parent=1 // pred_fallthru
      _
    // Predicated region
    $region34: #{fctqv_forward.1} parent=1 // pred_check
      _
    $region35: #{fctqv_forward.1} parent=1 // pred_check_branch
      %42 = sbr.rel (0) target = $region37
    $region36: #{fctqv_forward.1} parent=1 // pred_region
      _
    $region37: #{fctqv_forward.1} parent=1 // pred_fallthru
      _
    // Predicated region
    $region38: #{fctqv_forward.1} parent=1 // pred_check
      _
    $region39: #{fctqv_forward.1} parent=1 // pred_check_branch
      %44 = sbr.rel (0) target = $region41
    $region40: #{fctqv_forward.1} parent=1 // pred_region
      %45 = dma.done [#allocation3], 1024
    $region41: #{fctqv_forward.1} parent=1 // pred_fallthru
      _
    %v46 = vld [vmem:[%s0] sm:$0xff]
    %v47 = vld [vmem:[%s1] sm:$0xff]
    %v48 = vld [vmem:[%s1 + $0x8] sm:$0xff]
    %v49 = vld [vmem:[%s1 + $0x10] sm:$0xf]
    %v50 = vld [vmem:[%s5] sm:$0x1]
    %v52 = vlaneseq
    %v53 = vshrl.u32 %v52, 7
    %v54 = vsub.s32 0, %v53
    %v55 = vrot.slane %v50, %v54
    %vm57 = vcmask 162816
    %v59 = vsel %vm57, %v46, 0
    %vm61 = vcmask 1043456
    %v63 = vsel %vm61, %v49, 0
    %65 = vmatprep.subr.mxu0 0.0
    %66 = vmatpush1.msra.mxu0 0.0
    %67 = vmatprep.subr.mxu0 0.0
    %68 = vmatpush1.msra.mxu0 0.0
    %69 = vmatprep.subr.mxu0 0.0
    %70 = vmatpush1.msra.mxu0 0.0
    %71 = vmatprep.subr.mxu0 0.0
    %72 = vmatpush1.msra.mxu0 0.0
    %73 = vmatprep.subr.mxu0 0.0
    %74 = vmatpush1.msra.mxu0 0.0
    %75 = vmatprep.subr.mxu0 0.0
    %76 = vmatpush1.msra.mxu0 0.0
    %77 = vmatprep.subr.mxu0 0.0
    %78 = vmatpush1.msra.mxu0 0.0
    %79 = vmatprep.subr.mxu0 0.0
    %80 = vmatpush1.msra.mxu0 0.0
    %81 = vmatprep.subr.mxu0 0.0
    %82 = vmatpush1.msra.mxu0 0.0
    %83 = vmatprep.subr.mxu0 0.0
    %84 = vmatpush1.msra.mxu0 0.0
    %85 = vmatprep.subr.mxu0 0.0
    %86 = vmatpush1.msra.mxu0 0.0
    %87 = vmatprep.subr.mxu0 0.0
    %88 = vmatpush1.msra.mxu0 0.0
    %89 = vmatprep.subr.mxu0 0.0
    %90 = vmatpush1.msra.mxu0 0.0
    %91 = vmatprep.subr.mxu0 0.0
    %92 = vmatpush1.msra.mxu0 %v63
    %93 = vmatprep.subr.mxu0 0.0
    %94 = vmatpush1.msra.mxu0 %v48
    %95 = vmatprep.subr.mxu0 0.0
    %96 = vmatpush1.msra.mxu0 %v47
    %97 = vmatprep.subr.mxu0 0.0
    %98 = vmatpush2.msra.mxu0 0.0
    %99 = vmatprep.subr.mxu0 0.0
    %100 = vmatpush2.msra.mxu0 0.0
    %101 = vmatprep.subr.mxu0 0.0
    %102 = vmatpush2.msra.mxu0 0.0
    %103 = vmatprep.subr.mxu0 0.0
    %104 = vmatpush2.msra.mxu0 0.0
    %105 = vmatprep.subr.mxu0 0.0
    %106 = vmatpush2.msra.mxu0 0.0
    %107 = vmatprep.subr.mxu0 0.0
    %108 = vmatpush2.msra.mxu0 0.0
    %109 = vmatprep.subr.mxu0 0.0
    %110 = vmatpush2.msra.mxu0 0.0
    %111 = vmatprep.subr.mxu0 0.0
    %112 = vmatpush2.msra.mxu0 0.0
    %113 = vmatprep.subr.mxu0 0.0
    %114 = vmatpush2.msra.mxu0 0.0
    %115 = vmatprep.subr.mxu0 0.0
    %116 = vmatpush2.msra.mxu0 0.0
    %117 = vmatprep.subr.mxu0 0.0
    %118 = vmatpush2.msra.mxu0 0.0
    %119 = vmatprep.subr.mxu0 0.0
    %120 = vmatpush2.msra.mxu0 0.0
    %121 = vmatprep.subr.mxu0 0.0
    %122 = vmatpush2.msra.mxu0 0.0
    %123 = vmatprep.subr.mxu0 0.0
    %124 = vmatpush2.msra.mxu0 0.0
    %125 = vmatprep.subr.mxu0 0.0
    %126 = vmatpush2.msra.mxu0 0.0
    %127 = vmatprep.subr.mxu0 0.0
    %128 = vmatpush2.msra.mxu0 0.0
    %129 = vmatprep.mubr.f32.mxu0 0.0
    %130 = vmatmul.mubr.f32.gmra.mxu0 %v59
    %v131 = vpop.f32.mrf.mxu0
    %v132 = vadd.f32 %v55, %v131
    %v133 = vpop.f32.mrf.mxu0
    %134 = vdwg.mxu0
    %v135 = vtanh.pop %v132
    %v136 = vld [vmem:[#allocation2] sm:$0xff]
    %v137 = vld [vmem:[#allocation2 + $0x8] sm:$0xff]
    %v138 = vld [vmem:[#allocation2 + $0x10] sm:$0xff]
    %v139 = vld [vmem:[#allocation2 + $0x18] sm:$0xff]
    %v140 = vld [vmem:[#allocation2 + $0x20] sm:$0xff]
    %v141 = vld [vmem:[#allocation2 + $0x28] sm:$0xff]
    %v142 = vld [vmem:[#allocation2 + $0x30] sm:$0xff]
    %v143 = vld [vmem:[#allocation2 + $0x38] sm:$0xff]
    %v144 = vld [vmem:[%s6] sm:$0x1]
    %v146 = vlaneseq
    %v147 = vshrl.u32 %v146, 7
    %v148 = vsub.s32 0, %v147
    %v149 = vrot.slane %v144, %v148
    %vm151 = vcmask 523264
    %v153 = vsel %vm151, %v135, 0
    %155 = vmatprep.subr.mxu0 0.0
    %156 = vmatpush1.msra.mxu0 0.0
    %157 = vmatprep.subr.mxu0 0.0
    %158 = vmatpush1.msra.mxu0 0.0
    %159 = vmatprep.subr.mxu0 0.0
    %160 = vmatpush1.msra.mxu0 0.0
    %161 = vmatprep.subr.mxu0 0.0
    %162 = vmatpush1.msra.mxu0 0.0
    %163 = vmatprep.subr.mxu0 0.0
    %164 = vmatpush1.msra.mxu0 0.0
    %165 = vmatprep.subr.mxu0 0.0
    %166 = vmatpush1.msra.mxu0 0.0
    %167 = vmatprep.subr.mxu0 0.0
    %168 = vmatpush1.msra.mxu0 0.0
    %169 = vmatprep.subr.mxu0 0.0
    %170 = vmatpush1.msra.mxu0 0.0
    %171 = vmatprep.subr.mxu0 0.0
    %172 = vmatpush1.msra.mxu0 %v143
    %173 = vmatprep.subr.mxu0 0.0
    %174 = vmatpush1.msra.mxu0 %v142
    %175 = vmatprep.subr.mxu0 0.0
    %176 = vmatpush1.msra.mxu0 %v141
    %177 = vmatprep.subr.mxu0 0.0
    %178 = vmatpush1.msra.mxu0 %v140
    %179 = vmatprep.subr.mxu0 0.0
    %180 = vmatpush1.msra.mxu0 %v139
    %181 = vmatprep.subr.mxu0 0.0
    %182 = vmatpush1.msra.mxu0 %v138
    %183 = vmatprep.subr.mxu0 0.0
    %184 = vmatpush1.msra.mxu0 %v137
    %185 = vmatprep.subr.mxu0 0.0
    %186 = vmatpush1.msra.mxu0 %v136
    %187 = vmatprep.subr.mxu0 0.0
    %188 = vmatpush2.msra.mxu0 0.0
    %189 = vmatprep.subr.mxu0 0.0
    %190 = vmatpush2.msra.mxu0 0.0
    %191 = vmatprep.subr.mxu0 0.0
    %192 = vmatpush2.msra.mxu0 0.0
    %193 = vmatprep.subr.mxu0 0.0
    %194 = vmatpush2.msra.mxu0 0.0
    %195 = vmatprep.subr.mxu0 0.0
    %196 = vmatpush2.msra.mxu0 0.0
    %197 = vmatprep.subr.mxu0 0.0
    %198 = vmatpush2.msra.mxu0 0.0
    %199 = vmatprep.subr.mxu0 0.0
    %200 = vmatpush2.msra.mxu0 0.0
    %201 = vmatprep.subr.mxu0 0.0
    %202 = vmatpush2.msra.mxu0 0.0
    %203 = vmatprep.subr.mxu0 0.0
    %204 = vmatpush2.msra.mxu0 0.0
    %205 = vmatprep.subr.mxu0 0.0
    %206 = vmatpush2.msra.mxu0 0.0
    %207 = vmatprep.subr.mxu0 0.0
    %208 = vmatpush2.msra.mxu0 0.0
    %209 = vmatprep.subr.mxu0 0.0
    %210 = vmatpush2.msra.mxu0 0.0
    %211 = vmatprep.subr.mxu0 0.0
    %212 = vmatpush2.msra.mxu0 0.0
    %213 = vmatprep.subr.mxu0 0.0
    %214 = vmatpush2.msra.mxu0 0.0
    %215 = vmatprep.subr.mxu0 0.0
    %216 = vmatpush2.msra.mxu0 0.0
    %217 = vmatprep.subr.mxu0 0.0
    %218 = vmatpush2.msra.mxu0 0.0
    %219 = vmatprep.mubr.f32.mxu0 0.0
    %220 = vmatmul.mubr.f32.gmra.mxu0 %v153
    %v221 = vpop.f32.mrf.mxu0
    %v222 = vadd.f32 %v149, %v221
    %v223 = vpop.f32.mrf.mxu0
    %224 = vdwg.mxu0
    %v225 = vtanh.pop %v222
    %v226 = vld [vmem:[%s3] sm:$0xff]
    %v227 = vld [vmem:[%s3 + $0x8] sm:$0xff]
    %v228 = vld [vmem:[%s3 + $0x10] sm:$0xff]
    %v229 = vld [vmem:[%s3 + $0x18] sm:$0xff]
    %v230 = vld [vmem:[%s3 + $0x20] sm:$0xff]
    %v231 = vld [vmem:[%s3 + $0x28] sm:$0xff]
    %v232 = vld [vmem:[%s3 + $0x30] sm:$0xff]
    %v233 = vld [vmem:[%s3 + $0x38] sm:$0xff]
    %v234 = vld [vmem:[%s3 + $0x40] sm:$0xff]
    %v235 = vld [vmem:[%s3 + $0x48] sm:$0xff]
    %v236 = vld [vmem:[%s3 + $0x50] sm:$0xff]
    %v237 = vld [vmem:[%s3 + $0x58] sm:$0xff]
    %v238 = vld [vmem:[%s3 + $0x60] sm:$0xff]
    %v239 = vld [vmem:[%s3 + $0x68] sm:$0xff]
    %v240 = vld [vmem:[%s3 + $0x70] sm:$0xff]
    %v241 = vld [vmem:[%s3 + $0x78] sm:$0xff]
    %v242 = vld [vmem:[%s3 + $0x80] sm:$0xff]
    %v243 = vld [vmem:[%s3 + $0x88] sm:$0xff]
    %v244 = vld [vmem:[%s3 + $0x90] sm:$0xff]
    %v245 = vld [vmem:[%s3 + $0x98] sm:$0xff]
    %v246 = vld [vmem:[%s3 + $0xa0] sm:$0xff]
    %v247 = vld [vmem:[%s3 + $0xa8] sm:$0xff]
    %v248 = vld [vmem:[%s3 + $0xb0] sm:$0xff]
    %v249 = vld [vmem:[%s3 + $0xb8] sm:$0xff]
    %v250 = vld [vmem:[%s3 + $0xc0] sm:$0xff]
    %v251 = vld [vmem:[%s3 + $0xc8] sm:$0xff]
    %v252 = vld [vmem:[%s3 + $0xd0] sm:$0xff]
    %v253 = vld [vmem:[%s3 + $0xd8] sm:$0xff]
    %v254 = vld [vmem:[%s3 + $0xe0] sm:$0xff]
    %v255 = vld [vmem:[%s3 + $0xe8] sm:$0xff]
    %v256 = vld [vmem:[%s3 + $0xf0] sm:$0xff]
    %v257 = vld [vmem:[%s3 + $0xf8] sm:$0xff]
    %v258 = vld [vmem:[%s7] sm:$0x3]
    %v260 = vlaneseq
    %v261 = vshrl.u32 %v260, 7
    %v262 = vsub.s32 0, %v261
    %v263 = vrot.slane %v258, %v262
    %v264 = vlaneseq
    %v265 = vshrl.u32 %v264, 7
    %v266 = vsub.s32 1, %v265
    %v267 = vrot.slane %v258, %v266
    %270 = vmatprep.subr.mxu0 %v257
    %271 = vmatpush1.msra.mxu0 %v256
    %272 = vmatprep.subr.mxu0 %v255
    %273 = vmatpush1.msra.mxu0 %v254
    %274 = vmatprep.subr.mxu0 %v253
    %275 = vmatpush1.msra.mxu0 %v252
    %276 = vmatprep.subr.mxu0 %v251
    %277 = vmatpush1.msra.mxu0 %v250
    %278 = vmatprep.subr.mxu0 %v249
    %279 = vmatpush1.msra.mxu0 %v248
    %280 = vmatprep.subr.mxu0 %v247
    %281 = vmatpush1.msra.mxu0 %v246
    %282 = vmatprep.subr.mxu0 %v245
    %283 = vmatpush1.msra.mxu0 %v244
    %284 = vmatprep.subr.mxu0 %v243
    %285 = vmatpush1.msra.mxu0 %v242
    %286 = vmatprep.subr.mxu0 %v241
    %287 = vmatpush1.msra.mxu0 %v240
    %288 = vmatprep.subr.mxu0 %v239
    %289 = vmatpush1.msra.mxu0 %v238
    %290 = vmatprep.subr.mxu0 %v237
    %291 = vmatpush1.msra.mxu0 %v236
    %292 = vmatprep.subr.mxu0 %v235
    %293 = vmatpush1.msra.mxu0 %v234
    %294 = vmatprep.subr.mxu0 %v233
    %295 = vmatpush1.msra.mxu0 %v232
    %296 = vmatprep.subr.mxu0 %v231
    %297 = vmatpush1.msra.mxu0 %v230
    %298 = vmatprep.subr.mxu0 %v229
    %299 = vmatpush1.msra.mxu0 %v228
    %300 = vmatprep.subr.mxu0 %v227
    %301 = vmatpush1.msra.mxu0 %v226
    %302 = vmatprep.subr.mxu0 0.0
    %303 = vmatpush2.msra.mxu0 0.0
    %304 = vmatprep.subr.mxu0 0.0
    %305 = vmatpush2.msra.mxu0 0.0
    %306 = vmatprep.subr.mxu0 0.0
    %307 = vmatpush2.msra.mxu0 0.0
    %308 = vmatprep.subr.mxu0 0.0
    %309 = vmatpush2.msra.mxu0 0.0
    %310 = vmatprep.subr.mxu0 0.0
    %311 = vmatpush2.msra.mxu0 0.0
    %312 = vmatprep.subr.mxu0 0.0
    %313 = vmatpush2.msra.mxu0 0.0
    %314 = vmatprep.subr.mxu0 0.0
    %315 = vmatpush2.msra.mxu0 0.0
    %316 = vmatprep.subr.mxu0 0.0
    %317 = vmatpush2.msra.mxu0 0.0
    %318 = vmatprep.subr.mxu0 0.0
    %319 = vmatpush2.msra.mxu0 0.0
    %320 = vmatprep.subr.mxu0 0.0
    %321 = vmatpush2.msra.mxu0 0.0
    %322 = vmatprep.subr.mxu0 0.0
    %323 = vmatpush2.msra.mxu0 0.0
    %324 = vmatprep.subr.mxu0 0.0
    %325 = vmatpush2.msra.mxu0 0.0
    %326 = vmatprep.subr.mxu0 0.0
    %327 = vmatpush2.msra.mxu0 0.0
    %328 = vmatprep.subr.mxu0 0.0
    %329 = vmatpush2.msra.mxu0 0.0
    %330 = vmatprep.subr.mxu0 0.0
    %331 = vmatpush2.msra.mxu0 0.0
    %332 = vmatprep.subr.mxu0 0.0
    %333 = vmatpush2.msra.mxu0 0.0
    %334 = vmatprep.mubr.f32.mxu0 0.0
    %335 = vmatmul.mubr.f32.gmra.mxu0 %v225
    %v336 = vpop.f32.mrf.mxu0
    %v337 = vadd.f32 %v263, %v336
    %v338 = vpop.f32.mrf.mxu0
    %v339 = vadd.f32 %v267, %v338
    %340 = vdwg.mxu0
    %v341 = vtanh.pop %v337
    %v342 = vtanh.pop %v339
    %v343 = vld [vmem:[%s4] sm:$0xff]
    %v344 = vld [vmem:[%s4 + $0x8] sm:$0xff]
    %v345 = vld [vmem:[%s4 + $0x10] sm:$0xff]
    %v346 = vld [vmem:[%s4 + $0x18] sm:$0xff]
    %v347 = vld [vmem:[%s4 + $0x20] sm:$0xff]
    %v348 = vld [vmem:[%s4 + $0x28] sm:$0xff]
    %v349 = vld [vmem:[%s4 + $0x30] sm:$0xff]
    %v350 = vld [vmem:[%s4 + $0x38] sm:$0xff]
    %v351 = vld [vmem:[%s4 + $0x40] sm:$0xff]
    %v352 = vld [vmem:[%s4 + $0x48] sm:$0xff]
    %v353 = vld [vmem:[%s4 + $0x50] sm:$0xff]
    %v354 = vld [vmem:[%s4 + $0x58] sm:$0xff]
    %v355 = vld [vmem:[%s4 + $0x60] sm:$0xff]
    %v356 = vld [vmem:[%s4 + $0x68] sm:$0xff]
    %v357 = vld [vmem:[%s4 + $0x70] sm:$0xff]
    %v358 = vld [vmem:[%s4 + $0x78] sm:$0xff]
    %v359 = vld [vmem:[%s4 + $0x80] sm:$0xff]
    %v360 = vld [vmem:[%s4 + $0x88] sm:$0xff]
    %v361 = vld [vmem:[%s4 + $0x90] sm:$0xff]
    %v362 = vld [vmem:[%s4 + $0x98] sm:$0xff]
    %v363 = vld [vmem:[%s4 + $0xa0] sm:$0xff]
    %v364 = vld [vmem:[%s4 + $0xa8] sm:$0xff]
    %v365 = vld [vmem:[%s4 + $0xb0] sm:$0xff]
    %v366 = vld [vmem:[%s4 + $0xb8] sm:$0xff]
    %v367 = vld [vmem:[%s4 + $0xc0] sm:$0xff]
    %v368 = vld [vmem:[%s4 + $0xc8] sm:$0xff]
    %v369 = vld [vmem:[%s4 + $0xd0] sm:$0xff]
    %v370 = vld [vmem:[%s4 + $0xd8] sm:$0xff]
    %v371 = vld [vmem:[%s4 + $0xe0] sm:$0xff]
    %v372 = vld [vmem:[%s4 + $0xe8] sm:$0xff]
    %v373 = vld [vmem:[%s4 + $0xf0] sm:$0xff]
    %v374 = vld [vmem:[%s4 + $0xf8] sm:$0xff]
    %v375 = vld [vmem:[%s8] sm:$0x1]
    %v377 = vlaneseq
    %v378 = vshrl.u32 %v377, 7
    %v379 = vsub.s32 0, %v378
    %v380 = vrot.slane %v375, %v379
    %382 = vmatprep.subr.mxu0 0.0
    %383 = vmatpush1.msra.mxu0 %v358
    %384 = vmatprep.subr.mxu0 0.0
    %385 = vmatpush1.msra.mxu0 %v357
    %386 = vmatprep.subr.mxu0 0.0
    %387 = vmatpush1.msra.mxu0 %v356
    %388 = vmatprep.subr.mxu0 0.0
    %389 = vmatpush1.msra.mxu0 %v355
    %390 = vmatprep.subr.mxu0 0.0
    %391 = vmatpush1.msra.mxu0 %v354
    %392 = vmatprep.subr.mxu0 0.0
    %393 = vmatpush1.msra.mxu0 %v353
    %394 = vmatprep.subr.mxu0 0.0
    %395 = vmatpush1.msra.mxu0 %v352
    %396 = vmatprep.subr.mxu0 0.0
    %397 = vmatpush1.msra.mxu0 %v351
    %398 = vmatprep.subr.mxu0 0.0
    %399 = vmatpush1.msra.mxu0 %v350
    %400 = vmatprep.subr.mxu0 0.0
    %401 = vmatpush1.msra.mxu0 %v349
    %402 = vmatprep.subr.mxu0 0.0
    %403 = vmatpush1.msra.mxu0 %v348
    %404 = vmatprep.subr.mxu0 0.0
    %405 = vmatpush1.msra.mxu0 %v347
    %406 = vmatprep.subr.mxu0 0.0
    %407 = vmatpush1.msra.mxu0 %v346
    %408 = vmatprep.subr.mxu0 0.0
    %409 = vmatpush1.msra.mxu0 %v345
    %410 = vmatprep.subr.mxu0 0.0
    %411 = vmatpush1.msra.mxu0 %v344
    %412 = vmatprep.subr.mxu0 0.0
    %413 = vmatpush1.msra.mxu0 %v343
    %414 = vmatprep.subr.mxu0 0.0
    %415 = vmatpush2.msra.mxu0 %v374
    %416 = vmatprep.subr.mxu0 0.0
    %417 = vmatpush2.msra.mxu0 %v373
    %418 = vmatprep.subr.mxu0 0.0
    %419 = vmatpush2.msra.mxu0 %v372
    %420 = vmatprep.subr.mxu0 0.0
    %421 = vmatpush2.msra.mxu0 %v371
    %422 = vmatprep.subr.mxu0 0.0
    %423 = vmatpush2.msra.mxu0 %v370
    %424 = vmatprep.subr.mxu0 0.0
    %425 = vmatpush2.msra.mxu0 %v369
    %426 = vmatprep.subr.mxu0 0.0
    %427 = vmatpush2.msra.mxu0 %v368
    %428 = vmatprep.subr.mxu0 0.0
    %429 = vmatpush2.msra.mxu0 %v367
    %430 = vmatprep.subr.mxu0 0.0
    %431 = vmatpush2.msra.mxu0 %v366
    %432 = vmatprep.subr.mxu0 0.0
    %433 = vmatpush2.msra.mxu0 %v365
    %434 = vmatprep.subr.mxu0 0.0
    %435 = vmatpush2.msra.mxu0 %v364
    %436 = vmatprep.subr.mxu0 0.0
    %437 = vmatpush2.msra.mxu0 %v363
    %438 = vmatprep.subr.mxu0 0.0
    %439 = vmatpush2.msra.mxu0 %v362
    %440 = vmatprep.subr.mxu0 0.0
    %441 = vmatpush2.msra.mxu0 %v361
    %442 = vmatprep.subr.mxu0 0.0
    %443 = vmatpush2.msra.mxu0 %v360
    %444 = vmatprep.subr.mxu0 0.0
    %445 = vmatpush2.msra.mxu0 %v359
    %446 = vmatprep.mubr.f32.mxu0 %v342
    %447 = vmatmul.mubr.f32.gmra.mxu0 %v341
    %v448 = vpop.f32.mrf.mxu0
    %v449 = vadd.f32 %v380, %v448
    %v450 = vpop.f32.mrf.mxu0
    %451 = vdwg.mxu0
    %vm452 = vcmask 64512
    %453 = vst.msk [vmem:[%s9] sm:$0xff] %vm452, %v449
    // Predicated region
    $region42: #{fctqv_forward.1} parent=1 // pred_check
      _
    $region43: #{fctqv_forward.1} parent=1 // pred_check_branch
      %455 = sbr.rel (0) target = $region45
    $region44: #{fctqv_forward.1} parent=1 // pred_region
      _
    $region45: #{fctqv_forward.1} parent=1 // pred_fallthru
      _
    // Predicated region
    $region46: #{fctqv_forward.1} parent=1 // pred_check
      _
    $region47: #{fctqv_forward.1} parent=1 // pred_check_branch
      %457 = sbr.rel (0) target = $region49
    $region48: #{fctqv_forward.1} parent=1 // pred_region
      _
    $region49: #{fctqv_forward.1} parent=1 // pred_fallthru
      _
    %458 = vsyncpa [#allocation3], 1

</llo_original>
